<compile_context>
chip_gen: v7x
topology: tpu7x:2x2x1
jax: 0.10.0
libtpu: 0.0.40
codegen_flags: <defaults>
</compile_context>

<pallas_src>
import math

import jax
import jax.numpy as jnp
from jax.experimental import pallas as pl
from jax.experimental.pallas import tpu as pltpu


def _prediction_kernel(x_ref, w1_ref, b1_ref, w2blk_ref, b2_ref, o_ref):
    # x_ref:     (T_in, N*E)   one batch element's activation slab (lane-dense)
    # w1_ref:    (T_out, T_in) conv1 weight
    # b1_ref:    (T_out, 1)    conv1 bias (broadcast over lanes)
    # w2blk_ref: (N*E, N)      kron(I_N, w2): conv2 weight + per-n segment sum
    # b2_ref:    (1, 1)        conv2 bias
    # o_ref:     (T_out, N)    per-batch output block
    x = x_ref[...]

    # conv1: 1x1 conv over the T_dim channel axis == one MXU matmul.
    h = jnp.dot(w1_ref[...], x, preferred_element_type=jnp.float32)       # (T_out, N*E)
    h = jnp.maximum(h + b1_ref[...], 0.0)                                  # bias + ReLU (VPU)

    # conv2: contract the embed dim per n -> one MXU matmul vs block-diag w2.
    out = jnp.dot(h, w2blk_ref[...], preferred_element_type=jnp.float32)   # (T_out, N)
    o_ref[...] = (out + b2_ref[...]).astype(o_ref.dtype)


def prepare_prediction_params(params, spatial_n):
    """One-time weight preprocessing (hoisted off the per-call path)."""
    w1 = jnp.asarray(params["w1"], jnp.float32)          # (T_out, T_in)
    b1 = jnp.asarray(params["b1"], jnp.float32)          # (T_out,)
    w2 = jnp.asarray(params["w2"], jnp.float32)          # (E,)
    b2 = jnp.asarray(params["b2"], jnp.float32)          # (1,)
    T_out = w1.shape[0]
    E = w2.shape[0]
    # Batch-independent block-diagonal conv2 operand: (N*E, N), built once.
    w2_blk = jnp.kron(jnp.eye(spatial_n, dtype=jnp.float32), w2.reshape(E, 1))
    return {
        "w1": w1,
        "b1_col": b1.reshape(T_out, 1),
        "w2_blk": w2_blk,
        "b2": b2.reshape(1, 1),
    }


def prediction_layer(x, prepared):
    """Pallas implementation of PredictionLayer.forward.

    x: (B, T_dim, N, embed_size)  ->  (B, N, output_T_dim)
    """
    B, T_in, N, E = x.shape
    w1 = prepared["w1"]
    T_out = w1.shape[0]
    NE = N * E
    assert prepared["w2_blk"].shape == (NE, N)

    # Metadata-only reshape (collapses contiguous trailing dims, no HBM copy).
    x2 = x.reshape(B, T_in, NE)

    out_tn = pl.pallas_call(
        _prediction_kernel,
        out_shape=jax.ShapeDtypeStruct((B, T_out, N), x.dtype),
        grid=(B,),
        in_specs=[
            pl.BlockSpec((None, T_in, NE), lambda b: (b, 0, 0)),   # per-b slab
            pl.BlockSpec((T_out, T_in), lambda b: (0, 0)),         # resident weights
            pl.BlockSpec((T_out, 1), lambda b: (0, 0)),
            pl.BlockSpec((NE, N), lambda b: (0, 0)),
            pl.BlockSpec((1, 1), lambda b: (0, 0)),
        ],
        out_specs=pl.BlockSpec((None, T_out, N), lambda b: (b, 0, 0)),
        compiler_params=pltpu.CompilerParams(
            dimension_semantics=("parallel",)),
    )(x2, w1, prepared["b1_col"], prepared["w2_blk"], prepared["b2"])

    # (B, T_out, N) -> (B, N, T_out): 512 B at these shapes, negligible.
    return jnp.transpose(out_tn, (0, 2, 1))


def _reference(x, params):
    """Pure-JAX mirror of the PyTorch forward."""
    w1, b1, w2, b2 = params["w1"], params["b1"], params["w2"], params["b2"]
    y = jnp.einsum("ot,btne->bone", w1, x) + b1[None, :, None, None]       # conv1
    y = jnp.maximum(y, 0.0)                                                # relu
    z = jnp.transpose(y, (0, 3, 2, 1))                                     # permute(0,3,2,1)
    out = jnp.einsum("e,benT->bnT", w2, z) + b2[0]                         # conv2 + squeeze(1)
    return out


if __name__ == "__main__":
    # Shapes implied by the forward: batch=2, T_dim=8 (seq), output_T_dim=4,
    # N=16 (spatial), embed_size=32 (hidden).
    B, N = 2, 16
    T_dim, output_T_dim, embed_size = 8, 4, 32

    key = jax.random.PRNGKey(0)
    kx, kw1, kb1, kw2, kb2 = jax.random.split(key, 5)

    x = jax.random.normal(kx, (B, T_dim, N, embed_size), dtype=jnp.float32)

    init1 = 1.0 / math.sqrt(T_dim)        # conv1 fan_in = T_dim * 1 * 1
    init2 = 1.0 / math.sqrt(embed_size)   # conv2 fan_in = embed_size * 1 * 1
    params = {
        "w1": jax.random.uniform(kw1, (output_T_dim, T_dim), jnp.float32, -init1, init1),
        "b1": jax.random.uniform(kb1, (output_T_dim,), jnp.float32, -init1, init1),
        "w2": jax.random.uniform(kw2, (embed_size,), jnp.float32, -init2, init2),
        "b2": jax.random.uniform(kb2, (1,), jnp.float32, -init2, init2),
    }

    # Weight-only preprocessing done ONCE (cacheable), not per forward call.
    prepared = prepare_prediction_params(params, spatial_n=N)
    prepared = jax.tree_util.tree_map(jax.block_until_ready, prepared)

    out = prediction_layer(x, prepared)
    out = jax.block_until_ready(out)

    ref = _reference(x, params)
    assert out.shape == (B, N, output_T_dim), out.shape
    assert jnp.allclose(out, ref, atol=1e-4, rtol=1e-4), "mismatch vs JAX reference"

    print("KERNEL_OK")
</pallas_src>

<mosaic_0001>
module attributes {stable_mosaic.version = 11 : i64} {
  func.func @_prediction_kernel(%arg0: i32, %arg1: memref<1x8x512xf32, #tpu.memory_space<vmem>>, %arg2: memref<4x8xf32, #tpu.memory_space<vmem>>, %arg3: memref<4x1xf32, #tpu.memory_space<vmem>>, %arg4: memref<512x16xf32, #tpu.memory_space<vmem>>, %arg5: memref<1x1xf32, #tpu.memory_space<vmem>>, %arg6: memref<1x4x16xf32, #tpu.memory_space<vmem>>) attributes {dimension_semantics = [#tpu.dimension_semantics<parallel>], iteration_bounds = array<i64: 2>, scalar_prefetch = 0 : i64, scratch_operands = 0 : i64, tpu.core_type = #tpu.core_type<tc>, window_params = [{transform_indices = @transform_0, window_bounds = array<i64: 1, 8, 512>}, {pipeline_mode = #tpu.pipeline_mode<synchronous>, transform_indices = @transform_1, window_bounds = array<i64: 4, 8>}, {pipeline_mode = #tpu.pipeline_mode<synchronous>, transform_indices = @transform_2, window_bounds = array<i64: 4, 1>}, {pipeline_mode = #tpu.pipeline_mode<synchronous>, transform_indices = @transform_3, window_bounds = array<i64: 512, 16>}, {pipeline_mode = #tpu.pipeline_mode<synchronous>, transform_indices = @transform_4, window_bounds = array<i64: 1, 1>}, {transform_indices = @transform_5, window_bounds = array<i64: 1, 4, 16>}]} {
    %c0 = arith.constant 0 : index
    %c0_0 = arith.constant 0 : index
    %c0_1 = arith.constant 0 : index
    %0 = vector.load %arg1[%c0, %c0_0, %c0_1] : memref<1x8x512xf32, #tpu.memory_space<vmem>>, vector<1x8x512xf32>
    %1 = vector.shape_cast %0 : vector<1x8x512xf32> to vector<8x512xf32>
    %c0_2 = arith.constant 0 : index
    %c0_3 = arith.constant 0 : index
    %2 = vector.load %arg2[%c0_2, %c0_3] : memref<4x8xf32, #tpu.memory_space<vmem>>, vector<4x8xf32>
    %cst = arith.constant dense<0.000000e+00> : vector<4x512xf32>
    %3 = tpu.matmul %2, %1, %cst {dimension_numbers = #tpu.dot_dimension_numbers<[1], [0], [0], [1], [0, 0, 1, 1], [], []>} : vector<4x8xf32>, vector<8x512xf32>, vector<4x512xf32> -> vector<4x512xf32>
    %c0_4 = arith.constant 0 : index
    %c0_5 = arith.constant 0 : index
    %4 = vector.load %arg3[%c0_4, %c0_5] : memref<4x1xf32, #tpu.memory_space<vmem>>, vector<4x1xf32>
    %5 = vector.broadcast %4 : vector<4x1xf32> to vector<4x512xf32>
    %6 = arith.addf %3, %5 : vector<4x512xf32>
    %cst_6 = arith.constant 0.000000e+00 : f32
    %7 = vector.broadcast %cst_6 : f32 to vector<4x512xf32>
    %8 = arith.maximumf %6, %7 : vector<4x512xf32>
    %c0_7 = arith.constant 0 : index
    %c0_8 = arith.constant 0 : index
    %9 = vector.load %arg4[%c0_7, %c0_8] : memref<512x16xf32, #tpu.memory_space<vmem>>, vector<512x16xf32>
    %cst_9 = arith.constant dense<0.000000e+00> : vector<4x16xf32>
    %10 = tpu.matmul %8, %9, %cst_9 {dimension_numbers = #tpu.dot_dimension_numbers<[1], [0], [0], [1], [0, 0, 1, 1], [], []>} : vector<4x512xf32>, vector<512x16xf32>, vector<4x16xf32> -> vector<4x16xf32>
    %c0_10 = arith.constant 0 : index
    %c0_11 = arith.constant 0 : index
    %11 = vector.load %arg5[%c0_10, %c0_11] : memref<1x1xf32, #tpu.memory_space<vmem>>, vector<1x1xf32>
    %12 = vector.broadcast %11 : vector<1x1xf32> to vector<4x16xf32>
    %13 = arith.addf %10, %12 : vector<4x16xf32>
    %c0_12 = arith.constant 0 : index
    %c0_13 = arith.constant 0 : index
    %c0_14 = arith.constant 0 : index
    %14 = vector.load %arg6[%c0_12, %c0_13, %c0_14] : memref<1x4x16xf32, #tpu.memory_space<vmem>>, vector<1x4x16xf32>
    %15 = vector.shape_cast %14 : vector<1x4x16xf32> to vector<4x16xf32>
    %16 = vector.shape_cast %13 : vector<4x16xf32> to vector<1x4x16xf32>
    tpu.vector_store %arg6[%c0_12, %c0_13, %c0_14], %16 {strides = array<i32>} : memref<1x4x16xf32, #tpu.memory_space<vmem>>, vector<1x4x16xf32>,
    return
  }
  func.func @transform_0(%arg0: i32) -> (i32, i32, i32) {
    %c0_i32 = arith.constant 0 : i32
    %c0_i32_0 = arith.constant 0 : i32
    %c0_i32_1 = arith.constant 0 : i32
    return %arg0, %c0_i32, %c0_i32_0 : i32, i32, i32
  }
  func.func @transform_1(%arg0: i32) -> (i32, i32) {
    %c0_i32 = arith.constant 0 : i32
    %c0_i32_0 = arith.constant 0 : i32
    %c0_i32_1 = arith.constant 0 : i32
    return %c0_i32, %c0_i32_0 : i32, i32
  }
  func.func @transform_2(%arg0: i32) -> (i32, i32) {
    %c0_i32 = arith.constant 0 : i32
    %c0_i32_0 = arith.constant 0 : i32
    %c0_i32_1 = arith.constant 0 : i32
    return %c0_i32, %c0_i32_0 : i32, i32
  }
  func.func @transform_3(%arg0: i32) -> (i32, i32) {
    %c0_i32 = arith.constant 0 : i32
    %c0_i32_0 = arith.constant 0 : i32
    %c0_i32_1 = arith.constant 0 : i32
    return %c0_i32, %c0_i32_0 : i32, i32
  }
  func.func @transform_4(%arg0: i32) -> (i32, i32) {
    %c0_i32 = arith.constant 0 : i32
    %c0_i32_0 = arith.constant 0 : i32
    %c0_i32_1 = arith.constant 0 : i32
    return %c0_i32, %c0_i32_0 : i32, i32
  }
  func.func @transform_5(%arg0: i32) -> (i32, i32, i32) {
    %c0_i32 = arith.constant 0 : i32
    %c0_i32_0 = arith.constant 0 : i32
    %c0_i32_1 = arith.constant 0 : i32
    return %arg0, %c0_i32, %c0_i32_0 : i32, i32, i32
  }
}

</mosaic_0001>

<llo_original>
// kernel: tpu_custom_call.1
$region0: #{tpu_custom_call.1}
  #allocation0 [shape = 'u32[]', space=smem, size = 0x4, offset = 0x4, fixed_abs, tag = 'smem constant byte address 0x4 - core index']
  #allocation1 [shape = 'u32[144,128]{1,0:T(1,128)}', space=vmem, size = 0x12000, scoped, tag = 'internal scratch']
  #allocation2 [shape = 'f32[1,1]{1,0:T(1,128)S(1)}', space=vmem, size = 0x200, scoped, tag = 'scoped memory for tpu_custom_call.1']
  %s0 = inlined_call_operand.vmem [shape: f32[2,8,512], index: 0, kind: input, shape index: {}]
  %s1 = inlined_call_operand.vmem [shape: f32[4,8], index: 1, kind: input, shape index: {}]
  %s2 = inlined_call_operand.vmem [shape: f32[4,1], index: 2, kind: input, shape index: {}]
  %s3 = inlined_call_operand.vmem [shape: f32[512,16], index: 3, kind: input, shape index: {}]
  %s4 = inlined_call_operand.<no memory space> [shape: f32[1,1], index: 4, kind: input, shape index: {}]
  %s5 = inlined_call_operand.hbm [shape: f32[2,4,16], index: 5, kind: output, shape index: {}]
  %s6 = sld [smem:[#allocation0]]
  $region53: #{tpu_custom_call.1} parent=0
    _
  %s8 = ssub.s32 1, %s6
  %s9 = scalar_select 0, %s8, %s6
  %v10 = vstv %s4
  %11 = vst [vmem:[#allocation2] sm:$0x1] %v10
  $region1: #{tpu_custom_call.1} parent=0
    #allocation3 [shape = 'u8[4096]{0}', space=vmem, size = 0x1000, scoped, tag = 'output window, operand 0']
    #allocation4 [shape = 's32[2]{0}', space=sflag, size = 0x8, scoped, tag = 'scoped memory for tpu_custom_call.1']
    %12 = vsyncpa [#allocation4], 0
    %s13 = scalar_lea.sflag [#allocation4], 1
    %14 = vsyncpa %s13, 0
    loop: start=0, step=1, limit=4
    $region2: #{tpu_custom_call.1} parent=1 // loop_pre_header
      _
    $region3: #{tpu_custom_call.1} parent=1 // loop_header
      %s16 = sphi 0, %s20
      %p17 = scmp.ge.s32.totalorder %s16, 4
      %s26 = sphi 0, %s28
      %s29 = sphi 0, %s26
      %s30 = sphi 0, %s29
      %s46 = sphi 0, %s30
      %s50 = sphi 0, %s50
      %s52 = sphi 0, %s50
      %s53 = sphi 0, %s52
      %s67 = sphi 0, %s53
      %s71 = sphi 0, %s71
      %s73 = sphi 0, %s71
      %s74 = sphi 0, %s73
      %s88 = sphi 0, %s74
      %s92 = sphi 0, %s92
      %s94 = sphi 0, %s92
      %s95 = sphi 0, %s94
      %s109 = sphi 0, %s95
      %s113 = sphi 0, %s113
      %s115 = sphi 0, %s113
      %s116 = sphi 0, %s115
      %s130 = sphi 0, %s116
      %s136 = sphi 0, %s138
      %s139 = sphi 0, %s136
      %s140 = sphi 0, %s139
      %s156 = sphi 0, %s140
    $region4: #{tpu_custom_call.1} parent=1 // loop_header_branch
      %19 = sbr.rel (%p17) target = $region8
    $region5: #{tpu_custom_call.1} parent=1 // loop_body
      %s21 = ssub.s32 %s16, 1
      %s22 = ssub.s32 %s16, 2
      %s23 = sadd.s32 %s16, 1
      %s24 = ssub.s32 %s16, %s23
      %p25 = scmp.eq.s32.totalorder %s24, 0
      %s27 = sadd.s32 %s26, 1
      %s28 = scalar_select %p25, %s26, %s27
      %p31 = pneg %p25
      %p32 = scmp.eq.s32.totalorder %s16, 1
      %p33 = por %p31, %p32
      %p34 = scmp.ne.s32.totalorder %s26, %s29
      %p35 = scmp.eq.s32.totalorder %s16, 0
      %p36 = por %p34, %p35
      %p37 = scmp.ne.s32.totalorder %s26, %s29
      %p38 = scmp.eq.s32.totalorder %s21, 1
      %p39 = por %p37, %p38
      %p40 = scmp.ne.s32.totalorder %s29, %s30
      %p41 = scmp.eq.s32.totalorder %s21, 0
      %p42 = por %p40, %p41
      %p43 = scmp.ne.s32.totalorder %s29, %s30
      %p44 = scmp.eq.s32.totalorder %s22, 1
      %p45 = por %p43, %p44
      %p47 = scmp.ne.s32.totalorder %s30, %s46
      %p48 = scmp.eq.s32.totalorder %s22, 0
      %p49 = por %p47, %p48
      %s51 = sadd.s32 %s50, 1
      %p54 = scmp.eq.s32.totalorder %s16, 1
      %p55 = scmp.ne.s32.totalorder %s50, %s52
      %p56 = scmp.eq.s32.totalorder %s16, 0
      %p57 = por %p55, %p56
      %p58 = scmp.ne.s32.totalorder %s50, %s52
      %p59 = scmp.eq.s32.totalorder %s21, 1
      %p60 = por %p58, %p59
      %p61 = scmp.ne.s32.totalorder %s52, %s53
      %p62 = scmp.eq.s32.totalorder %s21, 0
      %p63 = por %p61, %p62
      %p64 = scmp.ne.s32.totalorder %s52, %s53
      %p65 = scmp.eq.s32.totalorder %s22, 1
      %p66 = por %p64, %p65
      %p68 = scmp.ne.s32.totalorder %s53, %s67
      %p69 = scmp.eq.s32.totalorder %s22, 0
      %p70 = por %p68, %p69
      %s72 = sadd.s32 %s71, 1
      %p75 = scmp.eq.s32.totalorder %s16, 1
      %p76 = scmp.ne.s32.totalorder %s71, %s73
      %p77 = scmp.eq.s32.totalorder %s16, 0
      %p78 = por %p76, %p77
      %p79 = scmp.ne.s32.totalorder %s71, %s73
      %p80 = scmp.eq.s32.totalorder %s21, 1
      %p81 = por %p79, %p80
      %p82 = scmp.ne.s32.totalorder %s73, %s74
      %p83 = scmp.eq.s32.totalorder %s21, 0
      %p84 = por %p82, %p83
      %p85 = scmp.ne.s32.totalorder %s73, %s74
      %p86 = scmp.eq.s32.totalorder %s22, 1
      %p87 = por %p85, %p86
      %p89 = scmp.ne.s32.totalorder %s74, %s88
      %p90 = scmp.eq.s32.totalorder %s22, 0
      %p91 = por %p89, %p90
      %s93 = sadd.s32 %s92, 1
      %p96 = scmp.eq.s32.totalorder %s16, 1
      %p97 = scmp.ne.s32.totalorder %s92, %s94
      %p98 = scmp.eq.s32.totalorder %s16, 0
      %p99 = por %p97, %p98
      %p100 = scmp.ne.s32.totalorder %s92, %s94
      %p101 = scmp.eq.s32.totalorder %s21, 1
      %p102 = por %p100, %p101
      %p103 = scmp.ne.s32.totalorder %s94, %s95
      %p104 = scmp.eq.s32.totalorder %s21, 0
      %p105 = por %p103, %p104
      %p106 = scmp.ne.s32.totalorder %s94, %s95
      %p107 = scmp.eq.s32.totalorder %s22, 1
      %p108 = por %p106, %p107
      %p110 = scmp.ne.s32.totalorder %s95, %s109
      %p111 = scmp.eq.s32.totalorder %s22, 0
      %p112 = por %p110, %p111
      %s114 = sadd.s32 %s113, 1
      %p117 = scmp.eq.s32.totalorder %s16, 1
      %p118 = scmp.ne.s32.totalorder %s113, %s115
      %p119 = scmp.eq.s32.totalorder %s16, 0
      %p120 = por %p118, %p119
      %p121 = scmp.ne.s32.totalorder %s113, %s115
      %p122 = scmp.eq.s32.totalorder %s21, 1
      %p123 = por %p121, %p122
      %p124 = scmp.ne.s32.totalorder %s115, %s116
      %p125 = scmp.eq.s32.totalorder %s21, 0
      %p126 = por %p124, %p125
      %p127 = scmp.ne.s32.totalorder %s115, %s116
      %p128 = scmp.eq.s32.totalorder %s22, 1
      %p129 = por %p127, %p128
      %p131 = scmp.ne.s32.totalorder %s116, %s130
      %p132 = scmp.eq.s32.totalorder %s22, 0
      %p133 = por %p131, %p132
      %s134 = ssub.s32 %s16, %s23
      %p135 = scmp.eq.s32.totalorder %s134, 0
      %s137 = sadd.s32 %s136, 1
      %s138 = scalar_select %p135, %s136, %s137
      %p141 = pneg %p135
      %p142 = scmp.eq.s32.totalorder %s16, 1
      %p143 = por %p141, %p142
      %p144 = scmp.ne.s32.totalorder %s136, %s139
      %p145 = scmp.eq.s32.totalorder %s16, 0
      %p146 = por %p144, %p145
      %p147 = scmp.ne.s32.totalorder %s136, %s139
      %p148 = scmp.eq.s32.totalorder %s21, 1
      %p149 = por %p147, %p148
      %p150 = scmp.ne.s32.totalorder %s139, %s140
      %p151 = scmp.eq.s32.totalorder %s21, 0
      %p152 = por %p150, %p151
      %p153 = scmp.ne.s32.totalorder %s139, %s140
      %p154 = scmp.eq.s32.totalorder %s22, 1
      %p155 = por %p153, %p154
      %p157 = scmp.ne.s32.totalorder %s140, %s156
      %p158 = scmp.eq.s32.totalorder %s22, 0
      %p159 = por %p157, %p158
      %p160 = scmp.le.s32.totalorder 1, %s16
      %p161 = scmp.lt.s32.totalorder %s16, 3
      %p162 = pnand %p160, %p161
      %p163 = pneg %p162
      // Predicated region
      $region9: #{tpu_custom_call.1} parent=5 // pred_check
        _
      $region10: #{tpu_custom_call.1} parent=5 // pred_check_branch
        %165 = sbr.rel (%p162) target = $region12
      $region11: #{tpu_custom_call.1} parent=5 // pred_region
        %s166 = ssub.s32 %s16, 1
        // Predicated region
        $region13: #{tpu_custom_call.1} parent=11 // pred_check
          %p167 = pneg %p63
        $region14: #{tpu_custom_call.1} parent=11 // pred_check_branch
          %169 = sbr.rel (%p167) target = $region16
        $region15: #{tpu_custom_call.1} parent=11 // pred_region
          _
        $region16: #{tpu_custom_call.1} parent=11 // pred_fallthru
          _
        // Predicated region
        $region17: #{tpu_custom_call.1} parent=11 // pred_check
          %p170 = pneg %p84
        $region18: #{tpu_custom_call.1} parent=11 // pred_check_branch
          %172 = sbr.rel (%p170) target = $region20
        $region19: #{tpu_custom_call.1} parent=11 // pred_region
          _
        $region20: #{tpu_custom_call.1} parent=11 // pred_fallthru
          _
        // Predicated region
        $region21: #{tpu_custom_call.1} parent=11 // pred_check
          %p173 = pneg %p105
        $region22: #{tpu_custom_call.1} parent=11 // pred_check_branch
          %175 = sbr.rel (%p173) target = $region24
        $region23: #{tpu_custom_call.1} parent=11 // pred_region
          _
        $region24: #{tpu_custom_call.1} parent=11 // pred_fallthru
          _
        // Predicated region
        $region25: #{tpu_custom_call.1} parent=11 // pred_check
          %p176 = pneg %p126
        $region26: #{tpu_custom_call.1} parent=11 // pred_check_branch
          %178 = sbr.rel (%p176) target = $region28
        $region27: #{tpu_custom_call.1} parent=11 // pred_region
          _
        $region28: #{tpu_custom_call.1} parent=11 // pred_fallthru
          _
      $region12: #{tpu_custom_call.1} parent=5 // pred_fallthru
        _
      %p179 = scmp.lt.s32.totalorder %s16, 2
      // Predicated region
      $region29: #{tpu_custom_call.1} parent=5 // pred_check
        %p180 = pneg %p179
      $region30: #{tpu_custom_call.1} parent=5 // pred_check_branch
        %182 = sbr.rel (%p180) target = $region32
      $region31: #{tpu_custom_call.1} parent=5 // pred_region
        // Predicated region
        $region33: #{tpu_custom_call.1} parent=31 // pred_check
          %p183 = pneg %p36
        $region34: #{tpu_custom_call.1} parent=31 // pred_check_branch
          %185 = sbr.rel (%p183) target = $region36
        $region35: #{tpu_custom_call.1} parent=31 // pred_region
          %p186 = scmp.lt.s32.totalorder %s16, 1
          %s187 = scalar_select %p186, %s16, 1
          %s188 = smul.addr %s187, 4
          %s189 = smul.addr %s188, 8
          %s190 = scalar_lea.vmem %s0, %s189
        $region36: #{tpu_custom_call.1} parent=31 // pred_fallthru
          _
      $region32: #{tpu_custom_call.1} parent=5 // pred_fallthru
        _
      %p191 = scmp.le.s32.totalorder 1, %s16
      %p192 = scmp.lt.s32.totalorder %s16, 3
      %p193 = pnand %p191, %p192
      %p194 = pneg %p193
      // Predicated region
      $region37: #{tpu_custom_call.1} parent=5 // pred_check
        _
      $region38: #{tpu_custom_call.1} parent=5 // pred_check_branch
        %196 = sbr.rel (%p193) target = $region40
      $region39: #{tpu_custom_call.1} parent=5 // pred_region
        %s197 = ssub.s32 %s16, 1
        %p198 = scmp.lt.s32.totalorder %s21, 1
        %s199 = scalar_select %p198, %s21, 1
        %s200 = smul.addr %s199, 4
        %s201 = smul.addr %s200, 8
        %s202 = scalar_lea.vmem %s0, %s201
        %p203 = pneg %p42
        %p204 = pneg %p39
        %p205 = pneg %p63
        %p206 = pneg %p60
        %p207 = pneg %p84
        %p208 = pneg %p81
        %p209 = pneg %p105
        %p210 = pneg %p102
        %p211 = pneg %p126
        %p212 = pneg %p123
        %p213 = pneg %p152
        %p214 = pneg %p149
        %s215 = sand.u32 %s139, 1
        %s216 = scalar_lea.sflag [#allocation4], %s215
        %s217 = sand.u32 %s139, 1
        %s218 = smul.addr %s217, 4
        %s219 = scalar_lea.vmem [#allocation3], %s218
        %p220 = scmp.lt.s32.totalorder %s21, 1
        %s221 = scalar_select %p220, %s21, 1
        %s222 = smul.addr %s221, 4
        %s223 = smul.addr %s222, 8
        %s224 = scalar_lea.vmem %s0, %s223
        %v225 = vld [vmem:[%s224] sm:$0xff]
        %v226 = vld [vmem:[%s224 + $0x8] sm:$0xff]
        %v227 = vld [vmem:[%s224 + $0x10] sm:$0xff]
        %v228 = vld [vmem:[%s224 + $0x18] sm:$0xff]
        %v229 = vld [vmem:[%s1] sm:$0xf]
        %v230 = vld [vmem:[%s2] sm:$0xf]
        %232 = vset.pattern.permute.xlu0 0
        %233 = vperm.xlu0 %232, %v230
        %v234 = vpop.permute.xlu0 %233
        %vm236 = vcmask 64512
        %v238 = vsel %vm236, %v229, 0
        %240 = vmatprep.subr.mxu0 %v226
        %241 = vmatpush1.msra.mxu0 %v225
        %242 = vmatprep.subr.mxu0 0.0
        %243 = vmatpush1.msra.mxu0 0.0
        %244 = vmatprep.subr.mxu0 0.0
        %245 = vmatpush1.msra.mxu0 0.0
        %246 = vmatprep.subr.mxu0 0.0
        %247 = vmatpush1.msra.mxu0 0.0
        %248 = vmatprep.subr.mxu0 0.0
        %249 = vmatpush1.msra.mxu0 0.0
        %250 = vmatprep.subr.mxu0 0.0
        %251 = vmatpush1.msra.mxu0 0.0
        %252 = vmatprep.subr.mxu0 0.0
        %253 = vmatpush1.msra.mxu0 0.0
        %254 = vmatprep.subr.mxu0 0.0
        %255 = vmatpush1.msra.mxu0 0.0
        %256 = vmatprep.subr.mxu0 0.0
        %257 = vmatpush1.msra.mxu0 0.0
        %258 = vmatprep.subr.mxu0 0.0
        %259 = vmatpush1.msra.mxu0 0.0
        %260 = vmatprep.subr.mxu0 0.0
        %261 = vmatpush1.msra.mxu0 0.0
        %262 = vmatprep.subr.mxu0 0.0
        %263 = vmatpush1.msra.mxu0 0.0
        %264 = vmatprep.subr.mxu0 0.0
        %265 = vmatpush1.msra.mxu0 0.0
        %266 = vmatprep.subr.mxu0 0.0
        %267 = vmatpush1.msra.mxu0 0.0
        %268 = vmatprep.subr.mxu0 0.0
        %269 = vmatpush1.msra.mxu0 0.0
        %270 = vmatprep.subr.mxu0 0.0
        %271 = vmatpush1.msra.mxu0 0.0
        %272 = vmatprep.subr.mxu0 0.0
        %273 = vmatpush1.msra.mxu0 0.0
        %274 = vmatprep.subr.mxu0 0.0
        %275 = vmatpush1.msra.mxu0 0.0
        %276 = vmatprep.subr.mxu0 0.0
        %277 = vmatpush1.msra.mxu0 0.0
        %278 = vmatprep.subr.mxu0 0.0
        %279 = vmatpush1.msra.mxu0 0.0
        %280 = vmatprep.subr.mxu0 0.0
        %281 = vmatpush1.msra.mxu0 0.0
        %282 = vmatprep.subr.mxu0 0.0
        %283 = vmatpush1.msra.mxu0 0.0
        %284 = vmatprep.subr.mxu0 0.0
        %285 = vmatpush1.msra.mxu0 0.0
        %286 = vmatprep.subr.mxu0 0.0
        %287 = vmatpush1.msra.mxu0 0.0
        %288 = vmatprep.subr.mxu0 0.0
        %289 = vmatpush1.msra.mxu0 0.0
        %290 = vmatprep.subr.mxu0 0.0
        %291 = vmatpush1.msra.mxu0 0.0
        %292 = vmatprep.subr.mxu0 0.0
        %293 = vmatpush1.msra.mxu0 0.0
        %294 = vmatprep.subr.mxu0 0.0
        %295 = vmatpush1.msra.mxu0 0.0
        %296 = vmatprep.subr.mxu0 0.0
        %297 = vmatpush1.msra.mxu0 0.0
        %298 = vmatprep.subr.mxu0 0.0
        %299 = vmatpush1.msra.mxu0 0.0
        %300 = vmatprep.subr.mxu0 0.0
        %301 = vmatpush1.msra.mxu0 0.0
        %302 = vmatprep.subr.mxu0 0.0
        %303 = vmatpush1.msra.mxu0 0.0
        %304 = vmatprep.mubr.f32.mxu0 0.0
        %305 = vmatmul.mubr.f32.gmra.mrb[0].mxu0 %v238
        %v306 = vpop.f32.mrb[0].mxu0
        %v307 = vadd.f32 %v234, %v306
        %v308 = vpop.f32.mrb[0].mxu0
        %v309 = vadd.f32 %v234, %v308
        %310 = vdwg.mxu0
        %311 = vmatprep.subr.mxu0 %v228
        %312 = vmatpush1.msra.mxu0 %v227
        %313 = vmatprep.subr.mxu0 0.0
        %314 = vmatpush1.msra.mxu0 0.0
        %315 = vmatprep.subr.mxu0 0.0
        %316 = vmatpush1.msra.mxu0 0.0
        %317 = vmatprep.subr.mxu0 0.0
        %318 = vmatpush1.msra.mxu0 0.0
        %319 = vmatprep.subr.mxu0 0.0
        %320 = vmatpush1.msra.mxu0 0.0
        %321 = vmatprep.subr.mxu0 0.0
        %322 = vmatpush1.msra.mxu0 0.0
        %323 = vmatprep.subr.mxu0 0.0
        %324 = vmatpush1.msra.mxu0 0.0
        %325 = vmatprep.subr.mxu0 0.0
        %326 = vmatpush1.msra.mxu0 0.0
        %327 = vmatprep.subr.mxu0 0.0
        %328 = vmatpush1.msra.mxu0 0.0
        %329 = vmatprep.subr.mxu0 0.0
        %330 = vmatpush1.msra.mxu0 0.0
        %331 = vmatprep.subr.mxu0 0.0
        %332 = vmatpush1.msra.mxu0 0.0
        %333 = vmatprep.subr.mxu0 0.0
        %334 = vmatpush1.msra.mxu0 0.0
        %335 = vmatprep.subr.mxu0 0.0
        %336 = vmatpush1.msra.mxu0 0.0
        %337 = vmatprep.subr.mxu0 0.0
        %338 = vmatpush1.msra.mxu0 0.0
        %339 = vmatprep.subr.mxu0 0.0
        %340 = vmatpush1.msra.mxu0 0.0
        %341 = vmatprep.subr.mxu0 0.0
        %342 = vmatpush1.msra.mxu0 0.0
        %343 = vmatprep.subr.mxu0 0.0
        %344 = vmatpush1.msra.mxu0 0.0
        %345 = vmatprep.subr.mxu0 0.0
        %346 = vmatpush1.msra.mxu0 0.0
        %347 = vmatprep.subr.mxu0 0.0
        %348 = vmatpush1.msra.mxu0 0.0
        %349 = vmatprep.subr.mxu0 0.0
        %350 = vmatpush1.msra.mxu0 0.0
        %351 = vmatprep.subr.mxu0 0.0
        %352 = vmatpush1.msra.mxu0 0.0
        %353 = vmatprep.subr.mxu0 0.0
        %354 = vmatpush1.msra.mxu0 0.0
        %355 = vmatprep.subr.mxu0 0.0
        %356 = vmatpush1.msra.mxu0 0.0
        %357 = vmatprep.subr.mxu0 0.0
        %358 = vmatpush1.msra.mxu0 0.0
        %359 = vmatprep.subr.mxu0 0.0
        %360 = vmatpush1.msra.mxu0 0.0
        %361 = vmatprep.subr.mxu0 0.0
        %362 = vmatpush1.msra.mxu0 0.0
        %363 = vmatprep.subr.mxu0 0.0
        %364 = vmatpush1.msra.mxu0 0.0
        %365 = vmatprep.subr.mxu0 0.0
        %366 = vmatpush1.msra.mxu0 0.0
        %367 = vmatprep.subr.mxu0 0.0
        %368 = vmatpush1.msra.mxu0 0.0
        %369 = vmatprep.subr.mxu0 0.0
        %370 = vmatpush1.msra.mxu0 0.0
        %371 = vmatprep.subr.mxu0 0.0
        %372 = vmatpush1.msra.mxu0 0.0
        %373 = vmatprep.subr.mxu0 0.0
        %374 = vmatpush1.msra.mxu0 0.0
        %375 = vmatprep.mubr.f32.mxu0 0.0
        %376 = vmatmul.mubr.f32.gmra.mrb[0].mxu0 %v238
        %v377 = vpop.f32.mrb[0].mxu0
        %v378 = vadd.f32 %v234, %v377
        %v379 = vpop.f32.mrb[0].mxu0
        %v380 = vadd.f32 %v234, %v379
        %381 = vdwg.mxu0
        %v382 = vmax.f32 %v307, 0.0
        %v383 = vmax.f32 %v309, 0.0
        %v384 = vmax.f32 %v378, 0.0
        %v385 = vmax.f32 %v380, 0.0
        %v386 = vld [vmem:[%s3] sm:$0xff]
        %v387 = vld [vmem:[%s3 + $0x8] sm:$0xff]
        %v388 = vld [vmem:[%s3 + $0x10] sm:$0xff]
        %v389 = vld [vmem:[%s3 + $0x18] sm:$0xff]
        %v390 = vld [vmem:[%s3 + $0x20] sm:$0xff]
        %v391 = vld [vmem:[%s3 + $0x28] sm:$0xff]
        %v392 = vld [vmem:[%s3 + $0x30] sm:$0xff]
        %v393 = vld [vmem:[%s3 + $0x38] sm:$0xff]
        %v394 = vld [vmem:[%s3 + $0x40] sm:$0xff]
        %v395 = vld [vmem:[%s3 + $0x48] sm:$0xff]
        %v396 = vld [vmem:[%s3 + $0x50] sm:$0xff]
        %v397 = vld [vmem:[%s3 + $0x58] sm:$0xff]
        %v398 = vld [vmem:[%s3 + $0x60] sm:$0xff]
        %v399 = vld [vmem:[%s3 + $0x68] sm:$0xff]
        %v400 = vld [vmem:[%s3 + $0x70] sm:$0xff]
        %v401 = vld [vmem:[%s3 + $0x78] sm:$0xff]
        %v402 = vld [vmem:[%s3 + $0x80] sm:$0xff]
        %v403 = vld [vmem:[%s3 + $0x88] sm:$0xff]
        %v404 = vld [vmem:[%s3 + $0x90] sm:$0xff]
        %v405 = vld [vmem:[%s3 + $0x98] sm:$0xff]
        %v406 = vld [vmem:[%s3 + $0xa0] sm:$0xff]
        %v407 = vld [vmem:[%s3 + $0xa8] sm:$0xff]
        %v408 = vld [vmem:[%s3 + $0xb0] sm:$0xff]
        %v409 = vld [vmem:[%s3 + $0xb8] sm:$0xff]
        %v410 = vld [vmem:[%s3 + $0xc0] sm:$0xff]
        %v411 = vld [vmem:[%s3 + $0xc8] sm:$0xff]
        %v412 = vld [vmem:[%s3 + $0xd0] sm:$0xff]
        %v413 = vld [vmem:[%s3 + $0xd8] sm:$0xff]
        %v414 = vld [vmem:[%s3 + $0xe0] sm:$0xff]
        %v415 = vld [vmem:[%s3 + $0xe8] sm:$0xff]
        %v416 = vld [vmem:[%s3 + $0xf0] sm:$0xff]
        %v417 = vld [vmem:[%s3 + $0xf8] sm:$0xff]
        %v418 = vld [vmem:[%s3 + $0x100] sm:$0xff]
        %v419 = vld [vmem:[%s3 + $0x108] sm:$0xff]
        %v420 = vld [vmem:[%s3 + $0x110] sm:$0xff]
        %v421 = vld [vmem:[%s3 + $0x118] sm:$0xff]
        %v422 = vld [vmem:[%s3 + $0x120] sm:$0xff]
        %v423 = vld [vmem:[%s3 + $0x128] sm:$0xff]
        %v424 = vld [vmem:[%s3 + $0x130] sm:$0xff]
        %v425 = vld [vmem:[%s3 + $0x138] sm:$0xff]
        %v426 = vld [vmem:[%s3 + $0x140] sm:$0xff]
        %v427 = vld [vmem:[%s3 + $0x148] sm:$0xff]
        %v428 = vld [vmem:[%s3 + $0x150] sm:$0xff]
        %v429 = vld [vmem:[%s3 + $0x158] sm:$0xff]
        %v430 = vld [vmem:[%s3 + $0x160] sm:$0xff]
        %v431 = vld [vmem:[%s3 + $0x168] sm:$0xff]
        %v432 = vld [vmem:[%s3 + $0x170] sm:$0xff]
        %v433 = vld [vmem:[%s3 + $0x178] sm:$0xff]
        %v434 = vld [vmem:[%s3 + $0x180] sm:$0xff]
        %v435 = vld [vmem:[%s3 + $0x188] sm:$0xff]
        %v436 = vld [vmem:[%s3 + $0x190] sm:$0xff]
        %v437 = vld [vmem:[%s3 + $0x198] sm:$0xff]
        %v438 = vld [vmem:[%s3 + $0x1a0] sm:$0xff]
        %v439 = vld [vmem:[%s3 + $0x1a8] sm:$0xff]
        %v440 = vld [vmem:[%s3 + $0x1b0] sm:$0xff]
        %v441 = vld [vmem:[%s3 + $0x1b8] sm:$0xff]
        %v442 = vld [vmem:[%s3 + $0x1c0] sm:$0xff]
        %v443 = vld [vmem:[%s3 + $0x1c8] sm:$0xff]
        %v444 = vld [vmem:[%s3 + $0x1d0] sm:$0xff]
        %v445 = vld [vmem:[%s3 + $0x1d8] sm:$0xff]
        %v446 = vld [vmem:[%s3 + $0x1e0] sm:$0xff]
        %v447 = vld [vmem:[%s3 + $0x1e8] sm:$0xff]
        %v448 = vld [vmem:[%s3 + $0x1f0] sm:$0xff]
        %v449 = vld [vmem:[%s3 + $0x1f8] sm:$0xff]
        %v450 = vld [vmem:[#allocation2] sm:$0x1]
        %v452 = vlaneseq
        %v453 = vshrl.u32 %v452, 7
        %v454 = vsub.s32 0, %v453
        %v455 = vrot.slane %v450, %v454
        %456 = vset.pattern.permute.xlu0 0
        %457 = vperm.xlu0 %456, %v455
        %v458 = vpop.permute.xlu0 %457
        %460 = vmatprep.subr.mxu0 0.0
        %461 = vmatpush1.msra.mxu0 %v386
        %462 = vmatprep.subr.mxu0 0.0
        %463 = vmatpush1.msra.mxu0 %v387
        %464 = vmatprep.subr.mxu0 0.0
        %465 = vmatpush1.msra.mxu0 %v388
        %466 = vmatprep.subr.mxu0 0.0
        %467 = vmatpush1.msra.mxu0 %v389
        %468 = vmatprep.subr.mxu0 0.0
        %469 = vmatpush1.msra.mxu0 %v390
        %470 = vmatprep.subr.mxu0 0.0
        %471 = vmatpush1.msra.mxu0 %v391
        %472 = vmatprep.subr.mxu0 0.0
        %473 = vmatpush1.msra.mxu0 %v392
        %474 = vmatprep.subr.mxu0 0.0
        %475 = vmatpush1.msra.mxu0 %v393
        %476 = vmatprep.subr.mxu0 0.0
        %477 = vmatpush1.msra.mxu0 %v394
        %478 = vmatprep.subr.mxu0 0.0
        %479 = vmatpush1.msra.mxu0 %v395
        %480 = vmatprep.subr.mxu0 0.0
        %481 = vmatpush1.msra.mxu0 %v396
        %482 = vmatprep.subr.mxu0 0.0
        %483 = vmatpush1.msra.mxu0 %v397
        %484 = vmatprep.subr.mxu0 0.0
        %485 = vmatpush1.msra.mxu0 %v398
        %486 = vmatprep.subr.mxu0 0.0
        %487 = vmatpush1.msra.mxu0 %v399
        %488 = vmatprep.subr.mxu0 0.0
        %489 = vmatpush1.msra.mxu0 %v400
        %490 = vmatprep.subr.mxu0 0.0
        %491 = vmatpush1.msra.mxu0 %v401
        %492 = vmatprep.subr.mxu0 0.0
        %493 = vmatpush1.msra.mxu0 %v402
        %494 = vmatprep.subr.mxu0 0.0
        %495 = vmatpush1.msra.mxu0 %v403
        %496 = vmatprep.subr.mxu0 0.0
        %497 = vmatpush1.msra.mxu0 %v404
        %498 = vmatprep.subr.mxu0 0.0
        %499 = vmatpush1.msra.mxu0 %v405
        %500 = vmatprep.subr.mxu0 0.0
        %501 = vmatpush1.msra.mxu0 %v406
        %502 = vmatprep.subr.mxu0 0.0
        %503 = vmatpush1.msra.mxu0 %v407
        %504 = vmatprep.subr.mxu0 0.0
        %505 = vmatpush1.msra.mxu0 %v408
        %506 = vmatprep.subr.mxu0 0.0
        %507 = vmatpush1.msra.mxu0 %v409
        %508 = vmatprep.subr.mxu0 0.0
        %509 = vmatpush1.msra.mxu0 %v410
        %510 = vmatprep.subr.mxu0 0.0
        %511 = vmatpush1.msra.mxu0 %v411
        %512 = vmatprep.subr.mxu0 0.0
        %513 = vmatpush1.msra.mxu0 %v412
        %514 = vmatprep.subr.mxu0 0.0
        %515 = vmatpush1.msra.mxu0 %v413
        %516 = vmatprep.subr.mxu0 0.0
        %517 = vmatpush1.msra.mxu0 %v414
        %518 = vmatprep.subr.mxu0 0.0
        %519 = vmatpush1.msra.mxu0 %v415
        %520 = vmatprep.subr.mxu0 0.0
        %521 = vmatpush1.msra.mxu0 %v416
        %522 = vmatprep.subr.mxu0 0.0
        %523 = vmatpush1.msra.mxu0 %v417
        %524 = vmatprep.mubr.f32.mxu0 %v383
        %525 = vmatmul.mubr.f32.gmra.mrb[0].mxu0 %v382
        %v526 = vpop.f32.mrb[0].mxu0
        %v527 = vadd.f32 %v458, %v526
        %v528 = vpop.f32.mrb[0].mxu0
        %529 = vdwg.mxu0
        %530 = vmatprep.subr.mxu0 0.0
        %531 = vmatpush1.msra.mxu0 %v418
        %532 = vmatprep.subr.mxu0 0.0
        %533 = vmatpush1.msra.mxu0 %v419
        %534 = vmatprep.subr.mxu0 0.0
        %535 = vmatpush1.msra.mxu0 %v420
        %536 = vmatprep.subr.mxu0 0.0
        %537 = vmatpush1.msra.mxu0 %v421
        %538 = vmatprep.subr.mxu0 0.0
        %539 = vmatpush1.msra.mxu0 %v422
        %540 = vmatprep.subr.mxu0 0.0
        %541 = vmatpush1.msra.mxu0 %v423
        %542 = vmatprep.subr.mxu0 0.0
        %543 = vmatpush1.msra.mxu0 %v424
        %544 = vmatprep.subr.mxu0 0.0
        %545 = vmatpush1.msra.mxu0 %v425
        %546 = vmatprep.subr.mxu0 0.0
        %547 = vmatpush1.msra.mxu0 %v426
        %548 = vmatprep.subr.mxu0 0.0
        %549 = vmatpush1.msra.mxu0 %v427
        %550 = vmatprep.subr.mxu0 0.0
        %551 = vmatpush1.msra.mxu0 %v428
        %552 = vmatprep.subr.mxu0 0.0
        %553 = vmatpush1.msra.mxu0 %v429
        %554 = vmatprep.subr.mxu0 0.0
        %555 = vmatpush1.msra.mxu0 %v430
        %556 = vmatprep.subr.mxu0 0.0
        %557 = vmatpush1.msra.mxu0 %v431
        %558 = vmatprep.subr.mxu0 0.0
        %559 = vmatpush1.msra.mxu0 %v432
        %560 = vmatprep.subr.mxu0 0.0
        %561 = vmatpush1.msra.mxu0 %v433
        %562 = vmatprep.subr.mxu0 0.0
        %563 = vmatpush1.msra.mxu0 %v434
        %564 = vmatprep.subr.mxu0 0.0
        %565 = vmatpush1.msra.mxu0 %v435
        %566 = vmatprep.subr.mxu0 0.0
        %567 = vmatpush1.msra.mxu0 %v436
        %568 = vmatprep.subr.mxu0 0.0
        %569 = vmatpush1.msra.mxu0 %v437
        %570 = vmatprep.subr.mxu0 0.0
        %571 = vmatpush1.msra.mxu0 %v438
        %572 = vmatprep.subr.mxu0 0.0
        %573 = vmatpush1.msra.mxu0 %v439
        %574 = vmatprep.subr.mxu0 0.0
        %575 = vmatpush1.msra.mxu0 %v440
        %576 = vmatprep.subr.mxu0 0.0
        %577 = vmatpush1.msra.mxu0 %v441
        %578 = vmatprep.subr.mxu0 0.0
        %579 = vmatpush1.msra.mxu0 %v442
        %580 = vmatprep.subr.mxu0 0.0
        %581 = vmatpush1.msra.mxu0 %v443
        %582 = vmatprep.subr.mxu0 0.0
        %583 = vmatpush1.msra.mxu0 %v444
        %584 = vmatprep.subr.mxu0 0.0
        %585 = vmatpush1.msra.mxu0 %v445
        %586 = vmatprep.subr.mxu0 0.0
        %587 = vmatpush1.msra.mxu0 %v446
        %588 = vmatprep.subr.mxu0 0.0
        %589 = vmatpush1.msra.mxu0 %v447
        %590 = vmatprep.subr.mxu0 0.0
        %591 = vmatpush1.msra.mxu0 %v448
        %592 = vmatprep.subr.mxu0 0.0
        %593 = vmatpush1.msra.mxu0 %v449
        %594 = vmatprep.mubr.f32.mxu0 %v385
        %595 = vmatmul.mubr.f32.gmra.mrb[0].mxu0 %v384
        %v596 = vpop.f32.mrb[0].mxu0
        %v597 = vadd.f32 %v527, %v596
        %v598 = vpop.f32.mrb[0].mxu0
        %599 = vdwg.mxu0
        %vm600 = vcmask 125952
        %601 = vst.msk [vmem:[%s219] sm:$0xf] %vm600, %v597
        %s602 = sand.u32 %s139, 1
        %s603 = scalar_lea.sflag [#allocation4], %s602
        %s604 = sand.u32 %s139, 1
        %s605 = smul.addr %s604, 4
        %s606 = scalar_lea.vmem [#allocation3], %s605
        // Predicated region
        $region41: #{tpu_custom_call.1} parent=39 // pred_check
          %p607 = pneg %p149
        $region42: #{tpu_custom_call.1} parent=39 // pred_check_branch
          %609 = sbr.rel (%p607) target = $region44
        $region43: #{tpu_custom_call.1} parent=39 // pred_region
          %s611 = ssub.s32 64, 64
          %612 = vsyncadd %s603, %s611
          %s613 = smul.addr %s21, 64
          %s614 = scalar_lea.hbm %s5, %s613
          %s616 = sshll.u32 %s606, 4
          %s617 = int_to_ptr.vmem [resolvable:$true] %s616
          %619 = dma.vmem_to_hbm [thread:$0]  %s617, 64, %s614, %s603
        $region44: #{tpu_custom_call.1} parent=39 // pred_fallthru
          _
      $region40: #{tpu_custom_call.1} parent=5 // pred_fallthru
        _
      %p620 = scmp.le.s32.totalorder 2, %s16
      // Predicated region
      $region45: #{tpu_custom_call.1} parent=5 // pred_check
        %p621 = pneg %p620
      $region46: #{tpu_custom_call.1} parent=5 // pred_check_branch
        %623 = sbr.rel (%p621) target = $region48
      $region47: #{tpu_custom_call.1} parent=5 // pred_region
        %s624 = ssub.s32 %s16, 2
        // Predicated region
        $region49: #{tpu_custom_call.1} parent=47 // pred_check
          %p625 = pneg %p155
        $region50: #{tpu_custom_call.1} parent=47 // pred_check_branch
          %627 = sbr.rel (%p625) target = $region52
        $region51: #{tpu_custom_call.1} parent=47 // pred_region
          %s628 = sand.u32 %s140, 1
          %s629 = scalar_lea.sflag [#allocation4], %s628
          %s630 = sand.u32 %s140, 1
          %s631 = smul.addr %s630, 4
          %s632 = scalar_lea.vmem [#allocation3], %s631
          %633 = dma.done %s629, 64
        $region52: #{tpu_custom_call.1} parent=47 // pred_fallthru
          _
      $region48: #{tpu_custom_call.1} parent=5 // pred_fallthru
        _
    $region6: #{tpu_custom_call.1} parent=1 // loop_footer
      %s20 = sadd.s32 1, %s16
    $region7: #{tpu_custom_call.1} parent=1 // loop_footer_branch
      %15 = sbr.rel target = $region3
    $region8: #{tpu_custom_call.1} parent=1 // loop_exit
      _
    %634 = vsyncpa [#allocation4], 1
    %s635 = scalar_lea.sflag [#allocation4], 1
    %636 = vsyncpa %s635, 1

</llo_original>
